<compile_context>
chip_gen: v6e
topology: v6e:2x2x1
jax: 0.10.0
libtpu: 0.0.40
codegen_flags: <defaults>
</compile_context>

<pallas_src>
import numpy as np
import jax
import jax.numpy as jnp
from jax.experimental import pallas as pl
from jax.experimental.pallas import tpu as pltpu  # noqa: F401  (TPU backend import)

ACTIVATION_FN = ['none', 'relu', 'gelu', 'silu', 'tanh', 'sigmoid', 'leaky_relu']
ACTIVATION_IDX = {k: i for i, k in enumerate(ACTIVATION_FN)}
NUM_ACT = len(ACTIVATION_FN)      # 7 embedding rows
PAD_IDX = NUM_ACT                 # sentinel: output element stays 0 (the F.pad rows)
LANE = 128                        # TPU lane width


def _gather_kernel(idx_ref, table_ref, out_ref):
    """VPU select-gather: out[r, j] = table[idx[r, j], j], or 0 when idx == PAD_IDX.

    idx_ref:   (R, L) int32  per-element table-row index (host-static layout)
    table_ref: (NUM_ACT, L) f32  lane-tiled embedding table
    out_ref:   (R, L) f32
    """
    idx = idx_ref[...]
    acc = jnp.zeros(out_ref.shape, jnp.float32)
    # 7 compares + selects per output vreg; stays on the (otherwise idle) VPU slots,
    # no MXU push/pop for a 3%-utilized contraction.
    for k in range(NUM_ACT):
        row = table_ref[pl.ds(k, 1), :]          # (1, L) -> sublane broadcast
        acc = jnp.where(idx == k, row, acc)
    out_ref[...] = acc


def activation_embedding_forward(embedding_weight, activations, layer_layout):
    """embedding_weight: (7, D) float32.  Returns (sum(layer_layout), D) float32."""
    D = int(embedding_weight.shape[1])
    n_total = int(sum(layer_layout))

    # --- host-static glue: per-output-row table index (repeat_interleave + pad) ---
    act_indices = [ACTIVATION_IDX[a] for a in activations]
    assert len(act_indices) == len(layer_layout) - 2
    row_idx = np.full((n_total,), PAD_IDX, dtype=np.int32)
    offset = int(layer_layout[0])                       # leading pad rows stay PAD_IDX
    for a, count in zip(act_indices, layer_layout[1:-1]):
        row_idx[offset:offset + int(count)] = a
        offset += int(count)
    # trailing layer_layout[-1] rows stay PAD_IDX

    # --- lane-dense layout: fold `fold` consecutive output rows into the 128 lanes ---
    fold = LANE // D if (D < LANE and LANE % D == 0) else 1
    lanes = fold * D
    align = 8 * fold                                    # keep R a multiple of 8 sublanes
    n_pad = ((n_total + align - 1) // align) * align
    R = n_pad // fold

    row_idx_padded = np.full((n_pad,), PAD_IDX, dtype=np.int32)
    row_idx_padded[:n_total] = row_idx
    # idx_expanded[r, f*D + d] = row index of output row (r*fold + f)  (host-static)
    idx_expanded = np.repeat(row_idx_padded.reshape(R, fold), D, axis=1)   # (R, lanes)
    idx_expanded = jnp.asarray(idx_expanded)

    # lane-tiled table: table_tiled[k, j] = W[k, j % D]  -> (7, lanes)
    table_tiled = jnp.tile(embedding_weight.astype(jnp.float32), (1, fold))

    # Single grid step: whole-array blocks, everything resident in VMEM at once.
    out = pl.pallas_call(
        _gather_kernel,
        out_shape=jax.ShapeDtypeStruct((R, lanes), jnp.float32),
        grid=(1,),
        in_specs=[
            pl.BlockSpec((R, lanes), lambda i: (0, 0)),
            pl.BlockSpec((NUM_ACT, lanes), lambda i: (0, 0)),
        ],
        out_specs=pl.BlockSpec((R, lanes), lambda i: (0, 0)),
    )(idx_expanded, table_tiled)

    # (R, fold*D) -> (n_pad, D) is a row-major-compatible reshape (no data shuffle).
    out = out.reshape(n_pad, D)
    if n_pad != n_total:
        out = out[:n_total]
    return out


def _reference(embedding_weight, activations, layer_layout):
    """Plain-JAX reference mirroring the PyTorch forward."""
    act_indices = jnp.asarray([ACTIVATION_IDX[a] for a in activations], dtype=jnp.int32)
    emb = embedding_weight[act_indices]                                   # (n_hidden, D)
    emb = jnp.repeat(emb, np.asarray(layer_layout[1:-1]), axis=0)
    top = jnp.zeros((layer_layout[0], emb.shape[1]), emb.dtype)
    bot = jnp.zeros((layer_layout[-1], emb.shape[1]), emb.dtype)
    return jnp.concatenate([top, emb, bot], axis=0)


if __name__ == "__main__":
    embedding_dim = 32
    key = jax.random.PRNGKey(0)
    # torch.nn.Embedding initializes weights ~ N(0, 1); deterministic synthetic init here.
    embedding_weight = jax.random.normal(key, (NUM_ACT, embedding_dim), dtype=jnp.float32)

    activations = ['relu', 'gelu', 'tanh']          # one per hidden layer
    layer_layout = [3, 5, 4, 6, 2]                  # in, hidden..., out  -> N = 20 rows

    out = activation_embedding_forward(embedding_weight, activations, layer_layout)
    out = jax.block_until_ready(out)

    ref = _reference(embedding_weight, activations, layer_layout)
    assert out.shape == (sum(layer_layout), embedding_dim), out.shape
    np.testing.assert_allclose(np.asarray(out), np.asarray(ref), rtol=1e-6, atol=1e-6)

    print("KERNEL_OK")
</pallas_src>

<mosaic_0001>
module attributes {stable_mosaic.version = 11 : i64} {
  func.func @_gather_kernel(%arg0: i32, %arg1: memref<8x128xi32, #tpu.memory_space<vmem>>, %arg2: memref<7x128xf32, #tpu.memory_space<vmem>>, %arg3: memref<8x128xf32, #tpu.memory_space<vmem>>) attributes {dimension_semantics = [#tpu.dimension_semantics<arbitrary>], iteration_bounds = array<i64: 1>, scalar_prefetch = 0 : i64, scratch_operands = 0 : i64, tpu.core_type = #tpu.core_type<tc>, window_params = [{pipeline_mode = #tpu.pipeline_mode<synchronous>, transform_indices = @transform_0, window_bounds = array<i64: 8, 128>}, {pipeline_mode = #tpu.pipeline_mode<synchronous>, transform_indices = @transform_1, window_bounds = array<i64: 7, 128>}, {pipeline_mode = #tpu.pipeline_mode<synchronous>, transform_indices = @transform_2, window_bounds = array<i64: 8, 128>}]} {
    %c0 = arith.constant 0 : index
    %c0_0 = arith.constant 0 : index
    %0 = vector.load %arg1[%c0, %c0_0] : memref<8x128xi32, #tpu.memory_space<vmem>>, vector<8x128xi32>
    %cst = arith.constant 0.000000e+00 : f32
    %1 = vector.broadcast %cst : f32 to vector<8x128xf32>
    %c0_1 = arith.constant 0 : index
    %c0_2 = arith.constant 0 : index
    %2 = vector.load %arg2[%c0_1, %c0_2] : memref<7x128xf32, #tpu.memory_space<vmem>>, vector<1x128xf32>
    %c0_i32 = arith.constant 0 : i32
    %3 = vector.broadcast %c0_i32 : i32 to vector<8x128xi32>
    %4 = arith.cmpi eq, %0, %3 : vector<8x128xi32>
    %5 = vector.shape_cast %2 : vector<1x128xf32> to vector<1x128xf32>
    %6 = vector.broadcast %5 : vector<1x128xf32> to vector<8x128xf32>
    %7 = arith.select %4, %6, %1 : vector<8x128xi1>, vector<8x128xf32>
    %c1 = arith.constant 1 : index
    %c0_3 = arith.constant 0 : index
    %8 = vector.load %arg2[%c1, %c0_3] : memref<7x128xf32, #tpu.memory_space<vmem>>, vector<1x128xf32>
    %c1_i32 = arith.constant 1 : i32
    %9 = vector.broadcast %c1_i32 : i32 to vector<8x128xi32>
    %10 = arith.cmpi eq, %0, %9 : vector<8x128xi32>
    %11 = vector.shape_cast %8 : vector<1x128xf32> to vector<1x128xf32>
    %12 = vector.broadcast %11 : vector<1x128xf32> to vector<8x128xf32>
    %13 = arith.select %10, %12, %7 : vector<8x128xi1>, vector<8x128xf32>
    %c2 = arith.constant 2 : index
    %c0_4 = arith.constant 0 : index
    %14 = vector.load %arg2[%c2, %c0_4] : memref<7x128xf32, #tpu.memory_space<vmem>>, vector<1x128xf32>
    %c2_i32 = arith.constant 2 : i32
    %15 = vector.broadcast %c2_i32 : i32 to vector<8x128xi32>
    %16 = arith.cmpi eq, %0, %15 : vector<8x128xi32>
    %17 = vector.shape_cast %14 : vector<1x128xf32> to vector<1x128xf32>
    %18 = vector.broadcast %17 : vector<1x128xf32> to vector<8x128xf32>
    %19 = arith.select %16, %18, %13 : vector<8x128xi1>, vector<8x128xf32>
    %c3 = arith.constant 3 : index
    %c0_5 = arith.constant 0 : index
    %20 = vector.load %arg2[%c3, %c0_5] : memref<7x128xf32, #tpu.memory_space<vmem>>, vector<1x128xf32>
    %c3_i32 = arith.constant 3 : i32
    %21 = vector.broadcast %c3_i32 : i32 to vector<8x128xi32>
    %22 = arith.cmpi eq, %0, %21 : vector<8x128xi32>
    %23 = vector.shape_cast %20 : vector<1x128xf32> to vector<1x128xf32>
    %24 = vector.broadcast %23 : vector<1x128xf32> to vector<8x128xf32>
    %25 = arith.select %22, %24, %19 : vector<8x128xi1>, vector<8x128xf32>
    %c4 = arith.constant 4 : index
    %c0_6 = arith.constant 0 : index
    %26 = vector.load %arg2[%c4, %c0_6] : memref<7x128xf32, #tpu.memory_space<vmem>>, vector<1x128xf32>
    %c4_i32 = arith.constant 4 : i32
    %27 = vector.broadcast %c4_i32 : i32 to vector<8x128xi32>
    %28 = arith.cmpi eq, %0, %27 : vector<8x128xi32>
    %29 = vector.shape_cast %26 : vector<1x128xf32> to vector<1x128xf32>
    %30 = vector.broadcast %29 : vector<1x128xf32> to vector<8x128xf32>
    %31 = arith.select %28, %30, %25 : vector<8x128xi1>, vector<8x128xf32>
    %c5 = arith.constant 5 : index
    %c0_7 = arith.constant 0 : index
    %32 = vector.load %arg2[%c5, %c0_7] : memref<7x128xf32, #tpu.memory_space<vmem>>, vector<1x128xf32>
    %c5_i32 = arith.constant 5 : i32
    %33 = vector.broadcast %c5_i32 : i32 to vector<8x128xi32>
    %34 = arith.cmpi eq, %0, %33 : vector<8x128xi32>
    %35 = vector.shape_cast %32 : vector<1x128xf32> to vector<1x128xf32>
    %36 = vector.broadcast %35 : vector<1x128xf32> to vector<8x128xf32>
    %37 = arith.select %34, %36, %31 : vector<8x128xi1>, vector<8x128xf32>
    %c6 = arith.constant 6 : index
    %c0_8 = arith.constant 0 : index
    %38 = vector.load %arg2[%c6, %c0_8] : memref<7x128xf32, #tpu.memory_space<vmem>>, vector<1x128xf32>
    %c6_i32 = arith.constant 6 : i32
    %39 = vector.broadcast %c6_i32 : i32 to vector<8x128xi32>
    %40 = arith.cmpi eq, %0, %39 : vector<8x128xi32>
    %41 = vector.shape_cast %38 : vector<1x128xf32> to vector<1x128xf32>
    %42 = vector.broadcast %41 : vector<1x128xf32> to vector<8x128xf32>
    %43 = arith.select %40, %42, %37 : vector<8x128xi1>, vector<8x128xf32>
    %c0_9 = arith.constant 0 : index
    %c0_10 = arith.constant 0 : index
    %44 = vector.load %arg3[%c0_9, %c0_10] : memref<8x128xf32, #tpu.memory_space<vmem>>, vector<8x128xf32>
    tpu.vector_store %arg3[%c0_9, %c0_10], %43 {strides = array<i32>} : memref<8x128xf32, #tpu.memory_space<vmem>>, vector<8x128xf32>,
    return
  }
  func.func @transform_0(%arg0: i32) -> (i32, i32) {
    %c0_i32 = arith.constant 0 : i32
    %c0_i32_0 = arith.constant 0 : i32
    %c0_i32_1 = arith.constant 0 : i32
    return %c0_i32, %c0_i32_0 : i32, i32
  }
  func.func @transform_1(%arg0: i32) -> (i32, i32) {
    %c0_i32 = arith.constant 0 : i32
    %c0_i32_0 = arith.constant 0 : i32
    %c0_i32_1 = arith.constant 0 : i32
    return %c0_i32, %c0_i32_0 : i32, i32
  }
  func.func @transform_2(%arg0: i32) -> (i32, i32) {
    %c0_i32 = arith.constant 0 : i32
    %c0_i32_0 = arith.constant 0 : i32
    %c0_i32_1 = arith.constant 0 : i32
    return %c0_i32, %c0_i32_0 : i32, i32
  }
}

</mosaic_0001>

<llo_original>
// kernel: tpu_custom_call.1
$region0: #{tpu_custom_call.1}
  #allocation0 [shape = 'u32[]', space=smem, size = 0x4, offset = 0x4, fixed_abs, tag = 'smem constant byte address 0x4 - core index']
  #allocation1 [shape = 'u32[144,128]{1,0:T(1,128)}', space=vmem, size = 0x12000, scoped, tag = 'internal scratch']
  %s0 = inlined_call_operand.hbm [shape: s32[8,128], index: 0, kind: input, shape index: {}]
  %s1 = inlined_call_operand.hbm [shape: f32[7,128], index: 1, kind: input, shape index: {}]
  %s2 = inlined_call_operand.hbm [shape: f32[8,128], index: 2, kind: output, shape index: {}]
  %s3 = sld [smem:[#allocation0]]
  $region26: #{tpu_custom_call.1} parent=0
    _
  %s5 = ssub.s32 1, %s3
  %s6 = scalar_select 0, %s5, %s3
  $region1: #{tpu_custom_call.1} parent=0
    #allocation2 [shape = 'u8[4096]{0}', space=vmem, size = 0x1000, scoped, tag = 'input window, operand 0, single buffered']
    #allocation3 [shape = 's32[1]{0}', space=sflag, size = 0x4, scoped, tag = 'scoped memory for tpu_custom_call.1']
    #allocation4 [shape = 's32[1]{0}', space=sflag, size = 0x4, scoped, tag = 'scoped memory for tpu_custom_call.1']
    #allocation5 [shape = 'u8[4096]{0}', space=vmem, size = 0x1000, scoped, tag = 'input window, operand 1, single buffered']
    #allocation6 [shape = 's32[1]{0}', space=sflag, size = 0x4, scoped, tag = 'scoped memory for tpu_custom_call.1']
    #allocation7 [shape = 'u8[4096]{0}', space=vmem, size = 0x1000, scoped, tag = 'output window, operand 0, single buffered']
    %7 = vsyncpa [#allocation3], 0
    %8 = vsyncpa [#allocation6], 0
    %9 = vsyncpa [#allocation4], 0
    // Predicated region
    $region2: #{tpu_custom_call.1} parent=1 // pred_check
      _
    $region3: #{tpu_custom_call.1} parent=1 // pred_check_branch
      %11 = sbr.rel (0) target = $region5
    $region4: #{tpu_custom_call.1} parent=1 // pred_region
      %s13 = ssub.s32 128, 128
      %14 = vsyncadd [#allocation3], %s13
      %s16 = sshll.u32 [#allocation2], 4
      %s17 = int_to_ptr.vmem [resolvable:$true] %s16
      %19 = dma.hbm_to_vmem [thread:$0]  %s0, 128, %s17, [#allocation3]
    $region5: #{tpu_custom_call.1} parent=1 // pred_fallthru
      _
    // Predicated region
    $region6: #{tpu_custom_call.1} parent=1 // pred_check
      _
    $region7: #{tpu_custom_call.1} parent=1 // pred_check_branch
      %21 = sbr.rel (0) target = $region9
    $region8: #{tpu_custom_call.1} parent=1 // pred_region
      %s23 = ssub.s32 128, 128
      %24 = vsyncadd [#allocation6], %s23
      %s26 = sshll.u32 [#allocation5], 4
      %s27 = int_to_ptr.vmem [resolvable:$true] %s26
      %29 = dma.hbm_to_vmem [thread:$0]  %s1, 128, %s27, [#allocation6]
    $region9: #{tpu_custom_call.1} parent=1 // pred_fallthru
      _
    // Predicated region
    $region10: #{tpu_custom_call.1} parent=1 // pred_check
      _
    $region11: #{tpu_custom_call.1} parent=1 // pred_check_branch
      %31 = sbr.rel (0) target = $region13
    $region12: #{tpu_custom_call.1} parent=1 // pred_region
      %32 = dma.done [#allocation3], 128
    $region13: #{tpu_custom_call.1} parent=1 // pred_fallthru
      _
    // Predicated region
    $region14: #{tpu_custom_call.1} parent=1 // pred_check
      _
    $region15: #{tpu_custom_call.1} parent=1 // pred_check_branch
      %34 = sbr.rel (0) target = $region17
    $region16: #{tpu_custom_call.1} parent=1 // pred_region
      %35 = dma.done [#allocation6], 128
    $region17: #{tpu_custom_call.1} parent=1 // pred_fallthru
      _
    %v36 = vld [vmem:[#allocation2] sm:$0xff]
    %v37 = vld [vmem:[#allocation5] sm:$0x1]
    %vm38 = vcmp.eq.s32.totalorder %v36, 0
    %v39 = vlaneseq
    %v40 = vshrl.u32 %v39, 7
    %v41 = vsub.s32 0, %v40
    %v42 = vrot.slane %v37, %v41
    %v43 = vsel %vm38, %v42, 0.0
    %v44 = vld [vmem:[#allocation5 + $0x1] sm:$0x1]
    %vm45 = vcmp.eq.s32.totalorder %v36, 1
    %v46 = vlaneseq
    %v47 = vshrl.u32 %v46, 7
    %v48 = vsub.s32 0, %v47
    %v49 = vrot.slane %v44, %v48
    %v50 = vsel %vm45, %v49, %v43
    %v51 = vld [vmem:[#allocation5 + $0x2] sm:$0x1]
    %vm52 = vcmp.eq.s32.totalorder %v36, 2
    %v53 = vlaneseq
    %v54 = vshrl.u32 %v53, 7
    %v55 = vsub.s32 0, %v54
    %v56 = vrot.slane %v51, %v55
    %v57 = vsel %vm52, %v56, %v50
    %v58 = vld [vmem:[#allocation5 + $0x3] sm:$0x1]
    %vm59 = vcmp.eq.s32.totalorder %v36, 3
    %v60 = vlaneseq
    %v61 = vshrl.u32 %v60, 7
    %v62 = vsub.s32 0, %v61
    %v63 = vrot.slane %v58, %v62
    %v64 = vsel %vm59, %v63, %v57
    %v65 = vld [vmem:[#allocation5 + $0x4] sm:$0x1]
    %vm66 = vcmp.eq.s32.totalorder %v36, 4
    %v67 = vlaneseq
    %v68 = vshrl.u32 %v67, 7
    %v69 = vsub.s32 0, %v68
    %v70 = vrot.slane %v65, %v69
    %v71 = vsel %vm66, %v70, %v64
    %v72 = vld [vmem:[#allocation5 + $0x5] sm:$0x1]
    %vm73 = vcmp.eq.s32.totalorder %v36, 5
    %v74 = vlaneseq
    %v75 = vshrl.u32 %v74, 7
    %v76 = vsub.s32 0, %v75
    %v77 = vrot.slane %v72, %v76
    %v78 = vsel %vm73, %v77, %v71
    %v79 = vld [vmem:[#allocation5 + $0x6] sm:$0x1]
    %vm80 = vcmp.eq.s32.totalorder %v36, 6
    %v81 = vlaneseq
    %v82 = vshrl.u32 %v81, 7
    %v83 = vsub.s32 0, %v82
    %v84 = vrot.slane %v79, %v83
    %v85 = vsel %vm80, %v84, %v78
    %86 = vst [vmem:[#allocation7] sm:$0xff] %v85
    // Predicated region
    $region18: #{tpu_custom_call.1} parent=1 // pred_check
      _
    $region19: #{tpu_custom_call.1} parent=1 // pred_check_branch
      %88 = sbr.rel (0) target = $region21
    $region20: #{tpu_custom_call.1} parent=1 // pred_region
      %s90 = ssub.s32 128, 128
      %91 = vsyncadd [#allocation4], %s90
      %s93 = sshll.u32 [#allocation7], 4
      %s94 = int_to_ptr.vmem [resolvable:$true] %s93
      %96 = dma.vmem_to_hbm [thread:$0]  %s94, 128, %s2, [#allocation4]
    $region21: #{tpu_custom_call.1} parent=1 // pred_fallthru
      _
    // Predicated region
    $region22: #{tpu_custom_call.1} parent=1 // pred_check
      _
    $region23: #{tpu_custom_call.1} parent=1 // pred_check_branch
      %98 = sbr.rel (0) target = $region25
    $region24: #{tpu_custom_call.1} parent=1 // pred_region
      %99 = dma.done [#allocation4], 128
    $region25: #{tpu_custom_call.1} parent=1 // pred_fallthru
      _
    %100 = vsyncpa [#allocation3], 1
    %101 = vsyncpa [#allocation6], 1
    %102 = vsyncpa [#allocation4], 1

</llo_original>
